<compile_context>
chip_gen: v6e
topology: v6e:2x2x1
jax: 0.10.0
libtpu: 0.0.40
codegen_flags: <defaults>
</compile_context>

<pallas_src>
import jax
import jax.numpy as jnp
from jax.experimental import pallas as pl
from jax.experimental.pallas import tpu as pltpu


def ddpm_schedules(beta1, beta2, T):
    assert 0 < beta1 < beta2 < 1.0, "beta1 and beta2 must be in (0, 1)"
    beta_t = (beta2 - beta1) * jnp.arange(0, T + 1, dtype=jnp.float32) / T + beta1
    sqrt_beta_t = jnp.sqrt(beta_t)
    alpha_t = 1.0 - beta_t
    log_alpha_t = jnp.log(alpha_t)
    alphabar_t = jnp.exp(jnp.cumsum(log_alpha_t))
    sqrtab = jnp.sqrt(alphabar_t)
    oneover_sqrta = 1.0 / jnp.sqrt(alpha_t)
    sqrtmab = jnp.sqrt(1.0 - alphabar_t)
    mab_over_sqrtmab_inv = (1.0 - alpha_t) / sqrtmab
    return {
        "alpha_t": alpha_t,
        "oneover_sqrta": oneover_sqrta,
        "sqrt_beta_t": sqrt_beta_t,
        "alphabar_t": alphabar_t,
        "sqrtab": sqrtab,
        "sqrtmab": sqrtmab,
        "mab_over_sqrtmab": mab_over_sqrtmab_inv,
    }


def _pick_tiles(B, C, HW, vmem_budget=24 * 1024 * 1024):
    """Pick (nb, tile_n): batches per block and lane-tile width.

    Sized so the double-buffered f32 blocks (3 inputs + pred output) stay
    under `vmem_budget` (24 MiB keeps v7x's 64 MiB physical / 32 MiB scoped
    VMEM comfortable — one code path for v5e/v6e/v7x), while keeping at least
    2 grid steps whenever possible so both v7x TensorCores get work.
    """
    assert HW % 128 == 0, "H*W must be a multiple of 128"  # TODO(synk): pad odd spatial sizes (e.g. 28x28)
    elem_cap = max(128 * C, vmem_budget // (4 * 4 * 2))   # f32, (3 in + 1 out), double-buffered
    cap_n = max(128, ((elem_cap // C) // 128) * 128)
    tile_n = 128
    t = min(HW, cap_n)
    while t >= 128:
        if HW % t == 0:
            tile_n = t
            break
        t -= 128
    tiles_per_batch = HW // tile_n
    nb = 1
    for cand in range(B, 0, -1):
        if (B % cand == 0 and cand * C * tile_n <= elem_cap
                and (B // cand) * tiles_per_batch >= 2):
            nb = cand
            break
    return nb, tile_n


def ddpm_forward_pallas(x, cond, noise, sab_t, smab_t, w1, w2, emb):
    """Fused DDPM forward. Returns (pred NCHW f32, scalar MSE loss)."""
    B, C, H, W = x.shape
    HW = H * W
    nb, tile_n = _pick_tiles(B, C, HW)
    nbb = B // nb                 # batch blocks
    tpb = HW // tile_n            # lane tiles per batch

    # --- wrapper-side plumbing: views + tiny per-batch tables only ----------
    x3 = x.reshape(B, C, HW).astype(jnp.float32)        # reshape = view, no copy
    c3 = cond.reshape(B, C, HW).astype(jnp.float32)
    n3 = noise.reshape(B, C, HW).astype(jnp.float32)
    sab3 = sab_t.astype(jnp.float32).reshape(B, 1, 1)
    smab3 = smab_t.astype(jnp.float32).reshape(B, 1, 1)
    w1b = jnp.broadcast_to(w1.astype(jnp.float32), (B, C, C))   # a few hundred bytes
    w2b = jnp.broadcast_to(w2.astype(jnp.float32), (B, C, C))
    emb3 = emb.astype(jnp.float32).reshape(B, C, 1)

    def kernel(x_ref, c_ref, n_ref, sab_ref, smab_ref, w1_ref, w2_ref, emb_ref,
               pred_ref, loss_ref):
        nz = n_ref[...]                                           # (nb, C, tile_n) f32
        x_t = sab_ref[...] * x_ref[...] + smab_ref[...] * nz      # q(x_t | x_0)
        # TODO(synk): real nn_model (ContextUnet) is external; deterministic
        # channel-mixing stand-in keeps everything on the MXU (f32 accum).
        pred = (jnp.einsum("bok,bkt->bot", w1_ref[...], x_t,
                           preferred_element_type=jnp.float32)
                + jnp.einsum("bok,bkt->bot", w2_ref[...], c_ref[...],
                             preferred_element_type=jnp.float32)
                + emb_ref[...])                                   # (nb,C,1) lane-bcast
        pred_ref[...] = pred

        # MSE partial: one scalar per grid step (XLU reduce slot is idle here).
        d = nz - pred
        s = jnp.sum(d * d)
        loss_ref[...] = jnp.zeros((8, 128), jnp.float32) + s * (1.0 / 1024.0)

    data_spec = pl.BlockSpec((nb, C, tile_n), lambda b, t: (b, 0, t))

    def per_batch(shape):
        return pl.BlockSpec(shape, lambda b, t: (b, 0, 0))

    pred3, loss_blk = pl.pallas_call(
        kernel,
        out_shape=(
            jax.ShapeDtypeStruct((B, C, HW), jnp.float32),           # pred (lane-dense)
            jax.ShapeDtypeStruct((nbb * 8, tpb * 128), jnp.float32), # loss partials
        ),
        grid=(nbb, tpb),
        in_specs=[
            data_spec,                       # x
            data_spec,                       # cond
            data_spec,                       # noise
            per_batch((nb, 1, 1)),           # sqrtab[_ts]
            per_batch((nb, 1, 1)),           # sqrtmab[_ts]
            per_batch((nb, C, C)),           # W1 (acts on x_t channels)
            per_batch((nb, C, C)),           # W2 (acts on cond channels)
            per_batch((nb, C, 1)),           # (class, time) embedding
        ],
        out_specs=(
            data_spec,                                      # pred, view-reshapable to NCHW
            pl.BlockSpec((8, 128), lambda b, t: (b, t)),    # packed per-step loss block
        ),
        compiler_params=pltpu.CompilerParams(
            dimension_semantics=("parallel", "parallel"),   # dependency-free grid
            vmem_limit_bytes=32 * 1024 * 1024,              # safe on v5e/v6e/v7x
        ),
    )(x3, c3, n3, sab3, smab3, w1b, w2b, emb3)

    pred = pred3.reshape(B, C, H, W)                 # view
    loss = jnp.sum(loss_blk) / float(B * C * HW)     # MSELoss mean, finished in wrapper
    return pred, loss


if __name__ == "__main__":
    key = jax.random.PRNGKey(0)
    B, C, H, W = 2, 4, 16, 16
    n_T = 400
    n_classes = 10
    drop_prob = 0.1
    betas = (1e-4, 0.02)

    sched = ddpm_schedules(betas[0], betas[1], n_T)

    ks = jax.random.split(key, 10)
    # module inputs (x, cond, c)
    x = jax.random.normal(ks[0], (B, C, H, W), jnp.float32)
    cond = jax.random.normal(ks[1], (B, C, H, W), jnp.float32)
    c = jax.random.randint(ks[2], (B,), 0, n_classes)

    # DDPM.forward randomness, made deterministic via PRNGKey(0) splits
    _ts = jax.random.randint(ks[3], (B,), 1, n_T + 1)
    noise = jax.random.normal(ks[4], (B, C, H, W), jnp.float32)
    context_mask = jax.random.bernoulli(ks[5], drop_prob, (B,)).astype(jnp.float32)

    # deterministic synthetic nn_model parameters (channel-mixing linear + embeddings)
    w1 = jax.random.normal(ks[6], (C, C), jnp.float32) * 0.1    # acts on x_t channels
    w2 = jax.random.normal(ks[7], (C, C), jnp.float32) * 0.1    # acts on cond channels
    E = jax.random.normal(ks[8], (n_classes, C), jnp.float32) * 0.1   # class embedding
    te = jax.random.normal(ks[9], (C,), jnp.float32) * 0.1            # time embedding

    # per-batch schedule scalars + context/time embedding (plain-JAX glue)
    sab_t = sched["sqrtab"][_ts]
    smab_t = sched["sqrtmab"][_ts]
    t_norm = _ts.astype(jnp.float32) / n_T
    c_onehot = jax.nn.one_hot(c, n_classes, dtype=jnp.float32)
    emb = (c_onehot * (1.0 - context_mask)[:, None]) @ E + t_norm[:, None] * te  # (B, C)

    pred, loss = ddpm_forward_pallas(x, cond, noise, sab_t, smab_t, w1, w2, emb)
    jax.block_until_ready((pred, loss))

    # plain-JAX f32 reference
    x_t_ref = sab_t[:, None, None, None] * x + smab_t[:, None, None, None] * noise
    xr = x_t_ref.reshape(B, C, H * W)
    cr = cond.reshape(B, C, H * W)
    hp = jax.lax.Precision.HIGHEST
    pred_ref = (jnp.einsum("oc,bcp->bop", w1, xr, precision=hp)
                + jnp.einsum("oc,bcp->bop", w2, cr, precision=hp)
                + emb[:, :, None])
    loss_ref = jnp.mean((noise.reshape(B, C, H * W) - pred_ref) ** 2)

    assert jnp.allclose(pred.reshape(B, C, H * W), pred_ref, rtol=2e-3, atol=2e-3), \
        "pred mismatch"
    assert jnp.allclose(loss, loss_ref, rtol=2e-3, atol=1e-5), "loss mismatch"

    print("KERNEL_OK")
</pallas_src>

<mosaic_0001>
module attributes {stable_mosaic.version = 11 : i64} {
  func.func @kernel(%arg0: i32, %arg1: i32, %arg2: memref<1x4x256xf32, #tpu.memory_space<vmem>>, %arg3: memref<1x4x256xf32, #tpu.memory_space<vmem>>, %arg4: memref<1x4x256xf32, #tpu.memory_space<vmem>>, %arg5: memref<1x1x1xf32, #tpu.memory_space<vmem>>, %arg6: memref<1x1x1xf32, #tpu.memory_space<vmem>>, %arg7: memref<1x4x4xf32, #tpu.memory_space<vmem>>, %arg8: memref<1x4x4xf32, #tpu.memory_space<vmem>>, %arg9: memref<1x4x1xf32, #tpu.memory_space<vmem>>, %arg10: memref<1x4x256xf32, #tpu.memory_space<vmem>>, %arg11: memref<8x128xf32, #tpu.memory_space<vmem>>) attributes {dimension_semantics = [#tpu.dimension_semantics<parallel>, #tpu.dimension_semantics<parallel>], iteration_bounds = array<i64: 2, 1>, scalar_prefetch = 0 : i64, scratch_operands = 0 : i64, tpu.core_type = #tpu.core_type<tc>, window_params = [{transform_indices = @transform_0, window_bounds = array<i64: 1, 4, 256>}, {transform_indices = @transform_1, window_bounds = array<i64: 1, 4, 256>}, {transform_indices = @transform_2, window_bounds = array<i64: 1, 4, 256>}, {transform_indices = @transform_3, window_bounds = array<i64: 1, 1, 1>}, {transform_indices = @transform_4, window_bounds = array<i64: 1, 1, 1>}, {transform_indices = @transform_5, window_bounds = array<i64: 1, 4, 4>}, {transform_indices = @transform_6, window_bounds = array<i64: 1, 4, 4>}, {transform_indices = @transform_7, window_bounds = array<i64: 1, 4, 1>}, {transform_indices = @transform_8, window_bounds = array<i64: 1, 4, 256>}, {transform_indices = @transform_9, window_bounds = array<i64: 8, 128>}]} {
    %c0 = arith.constant 0 : index
    %c0_0 = arith.constant 0 : index
    %c0_1 = arith.constant 0 : index
    %0 = vector.load %arg4[%c0, %c0_0, %c0_1] : memref<1x4x256xf32, #tpu.memory_space<vmem>>, vector<1x4x256xf32>
    %c0_2 = arith.constant 0 : index
    %c0_3 = arith.constant 0 : index
    %c0_4 = arith.constant 0 : index
    %1 = vector.load %arg5[%c0_2, %c0_3, %c0_4] : memref<1x1x1xf32, #tpu.memory_space<vmem>>, vector<1x1x1xf32>
    %c0_5 = arith.constant 0 : index
    %c0_6 = arith.constant 0 : index
    %c0_7 = arith.constant 0 : index
    %2 = vector.load %arg2[%c0_5, %c0_6, %c0_7] : memref<1x4x256xf32, #tpu.memory_space<vmem>>, vector<1x4x256xf32>
    %3 = vector.broadcast %1 : vector<1x1x1xf32> to vector<1x4x256xf32>
    %4 = arith.mulf %3, %2 : vector<1x4x256xf32>
    %c0_8 = arith.constant 0 : index
    %c0_9 = arith.constant 0 : index
    %c0_10 = arith.constant 0 : index
    %5 = vector.load %arg6[%c0_8, %c0_9, %c0_10] : memref<1x1x1xf32, #tpu.memory_space<vmem>>, vector<1x1x1xf32>
    %6 = vector.broadcast %5 : vector<1x1x1xf32> to vector<1x4x256xf32>
    %7 = arith.mulf %6, %0 : vector<1x4x256xf32>
    %8 = arith.addf %4, %7 : vector<1x4x256xf32>
    %c0_11 = arith.constant 0 : index
    %c0_12 = arith.constant 0 : index
    %c0_13 = arith.constant 0 : index
    %9 = vector.load %arg7[%c0_11, %c0_12, %c0_13] : memref<1x4x4xf32, #tpu.memory_space<vmem>>, vector<1x4x4xf32>
    "tpu.trace_start"() <{level = 10 : i32, message = "bok,bkt->bot"}> : () -> ()
    %cst = arith.constant dense<0.000000e+00> : vector<1x4x256xf32>
    %10 = tpu.matmul %9, %8, %cst {dimension_numbers = #tpu.dot_dimension_numbers<[2], [1], [1], [2], [0, 0, 0, 1, 1, 2], [0], [0]>} : vector<1x4x4xf32>, vector<1x4x256xf32>, vector<1x4x256xf32> -> vector<1x4x256xf32>
    "tpu.trace_stop"() : () -> ()
    %c0_14 = arith.constant 0 : index
    %c0_15 = arith.constant 0 : index
    %c0_16 = arith.constant 0 : index
    %11 = vector.load %arg8[%c0_14, %c0_15, %c0_16] : memref<1x4x4xf32, #tpu.memory_space<vmem>>, vector<1x4x4xf32>
    %c0_17 = arith.constant 0 : index
    %c0_18 = arith.constant 0 : index
    %c0_19 = arith.constant 0 : index
    %12 = vector.load %arg3[%c0_17, %c0_18, %c0_19] : memref<1x4x256xf32, #tpu.memory_space<vmem>>, vector<1x4x256xf32>
    "tpu.trace_start"() <{level = 10 : i32, message = "bok,bkt->bot"}> : () -> ()
    %cst_20 = arith.constant dense<0.000000e+00> : vector<1x4x256xf32>
    %13 = tpu.matmul %11, %12, %cst_20 {dimension_numbers = #tpu.dot_dimension_numbers<[2], [1], [1], [2], [0, 0, 0, 1, 1, 2], [0], [0]>} : vector<1x4x4xf32>, vector<1x4x256xf32>, vector<1x4x256xf32> -> vector<1x4x256xf32>
    "tpu.trace_stop"() : () -> ()
    %14 = arith.addf %10, %13 : vector<1x4x256xf32>
    %c0_21 = arith.constant 0 : index
    %c0_22 = arith.constant 0 : index
    %c0_23 = arith.constant 0 : index
    %15 = vector.load %arg9[%c0_21, %c0_22, %c0_23] : memref<1x4x1xf32, #tpu.memory_space<vmem>>, vector<1x4x1xf32>
    %16 = vector.broadcast %15 : vector<1x4x1xf32> to vector<1x4x256xf32>
    %17 = arith.addf %14, %16 : vector<1x4x256xf32>
    %c0_24 = arith.constant 0 : index
    %c0_25 = arith.constant 0 : index
    %c0_26 = arith.constant 0 : index
    %18 = vector.load %arg10[%c0_24, %c0_25, %c0_26] : memref<1x4x256xf32, #tpu.memory_space<vmem>>, vector<1x4x256xf32>
    tpu.vector_store %arg10[%c0_24, %c0_25, %c0_26], %17 {strides = array<i32>} : memref<1x4x256xf32, #tpu.memory_space<vmem>>, vector<1x4x256xf32>,
    %19 = arith.subf %0, %17 : vector<1x4x256xf32>
    %20 = arith.mulf %19, %19 : vector<1x4x256xf32>
    %21 = vector.shape_cast %20 : vector<1x4x256xf32> to vector<1x1x4x256xf32>
    %cst_27 = arith.constant dense<0.000000e+00> : vector<1xf32>
    %22 = vector.multi_reduction <add>, %21, %cst_27 [1, 2, 3] : vector<1x1x4x256xf32> to vector<1xf32>
    %23 = vector.shape_cast %22 : vector<1xf32> to vector<1x1x1x1xf32>
    %24 = vector.extract %23[0, 0, 0, 0] : f32 from vector<1x1x1x1xf32>
    %cst_28 = arith.constant 0.000000e+00 : f32
    %25 = vector.broadcast %cst_28 : f32 to vector<8x128xf32>
    %cst_29 = arith.constant 9.765625E-4 : f32
    %26 = arith.mulf %24, %cst_29 : f32
    %27 = vector.broadcast %26 : f32 to vector<8x128xf32>
    %28 = arith.addf %25, %27 : vector<8x128xf32>
    %c0_30 = arith.constant 0 : index
    %c0_31 = arith.constant 0 : index
    %29 = vector.load %arg11[%c0_30, %c0_31] : memref<8x128xf32, #tpu.memory_space<vmem>>, vector<8x128xf32>
    tpu.vector_store %arg11[%c0_30, %c0_31], %28 {strides = array<i32>} : memref<8x128xf32, #tpu.memory_space<vmem>>, vector<8x128xf32>,
    return
  }
  func.func @transform_0(%arg0: i32, %arg1: i32) -> (i32, i32, i32) {
    %c0_i32 = arith.constant 0 : i32
    %c0_i32_0 = arith.constant 0 : i32
    return %arg0, %c0_i32, %arg1 : i32, i32, i32
  }
  func.func @transform_1(%arg0: i32, %arg1: i32) -> (i32, i32, i32) {
    %c0_i32 = arith.constant 0 : i32
    %c0_i32_0 = arith.constant 0 : i32
    return %arg0, %c0_i32, %arg1 : i32, i32, i32
  }
  func.func @transform_2(%arg0: i32, %arg1: i32) -> (i32, i32, i32) {
    %c0_i32 = arith.constant 0 : i32
    %c0_i32_0 = arith.constant 0 : i32
    return %arg0, %c0_i32, %arg1 : i32, i32, i32
  }
  func.func @transform_3(%arg0: i32, %arg1: i32) -> (i32, i32, i32) {
    %c0_i32 = arith.constant 0 : i32
    %c0_i32_0 = arith.constant 0 : i32
    %c0_i32_1 = arith.constant 0 : i32
    return %arg0, %c0_i32, %c0_i32_0 : i32, i32, i32
  }
  func.func @transform_4(%arg0: i32, %arg1: i32) -> (i32, i32, i32) {
    %c0_i32 = arith.constant 0 : i32
    %c0_i32_0 = arith.constant 0 : i32
    %c0_i32_1 = arith.constant 0 : i32
    return %arg0, %c0_i32, %c0_i32_0 : i32, i32, i32
  }
  func.func @transform_5(%arg0: i32, %arg1: i32) -> (i32, i32, i32) {
    %c0_i32 = arith.constant 0 : i32
    %c0_i32_0 = arith.constant 0 : i32
    %c0_i32_1 = arith.constant 0 : i32
    return %arg0, %c0_i32, %c0_i32_0 : i32, i32, i32
  }
  func.func @transform_6(%arg0: i32, %arg1: i32) -> (i32, i32, i32) {
    %c0_i32 = arith.constant 0 : i32
    %c0_i32_0 = arith.constant 0 : i32
    %c0_i32_1 = arith.constant 0 : i32
    return %arg0, %c0_i32, %c0_i32_0 : i32, i32, i32
  }
  func.func @transform_7(%arg0: i32, %arg1: i32) -> (i32, i32, i32) {
    %c0_i32 = arith.constant 0 : i32
    %c0_i32_0 = arith.constant 0 : i32
    %c0_i32_1 = arith.constant 0 : i32
    return %arg0, %c0_i32, %c0_i32_0 : i32, i32, i32
  }
  func.func @transform_8(%arg0: i32, %arg1: i32) -> (i32, i32, i32) {
    %c0_i32 = arith.constant 0 : i32
    %c0_i32_0 = arith.constant 0 : i32
    return %arg0, %c0_i32, %arg1 : i32, i32, i32
  }
  func.func @transform_9(%arg0: i32, %arg1: i32) -> (i32, i32) {
    %c0_i32 = arith.constant 0 : i32
    return %arg0, %arg1 : i32, i32
  }
}

</mosaic_0001>

<llo_original>
// kernel: tpu_custom_call.1
$region0: #{tpu_custom_call.1}
  #allocation0 [shape = 'u32[]', space=smem, size = 0x4, offset = 0x4, fixed_abs, tag = 'smem constant byte address 0x4 - core index']
  #allocation1 [shape = 'u32[144,128]{1,0:T(1,128)}', space=vmem, size = 0x12000, scoped, tag = 'internal scratch']
  %s0 = inlined_call_operand.vmem [shape: f32[2,4,256], index: 0, kind: input, shape index: {}]
  %s1 = inlined_call_operand.hbm [shape: f32[2,4,256], index: 1, kind: input, shape index: {}]
  %s2 = inlined_call_operand.hbm [shape: f32[2,4,256], index: 2, kind: input, shape index: {}]
  %s3 = inlined_call_operand.vmem [shape: f32[2,1,1], index: 3, kind: input, shape index: {}]
  %s4 = inlined_call_operand.vmem [shape: f32[2,1,1], index: 4, kind: input, shape index: {}]
  %s5 = inlined_call_operand.vmem [shape: f32[2,4,4], index: 5, kind: input, shape index: {}]
  %s6 = inlined_call_operand.hbm [shape: f32[2,4,4], index: 6, kind: input, shape index: {}]
  %s7 = inlined_call_operand.vmem [shape: f32[2,4,1], index: 7, kind: input, shape index: {}]
  %s8 = inlined_call_operand.hbm [shape: f32[2,4,256], index: 8, kind: output, shape index: {0}]
  %s9 = inlined_call_operand.hbm [shape: f32[16,128], index: 9, kind: output, shape index: {1}]
  %10 = xla_tuple %s8, %s9
  %s11 = sld [smem:[#allocation0]]
  $region85: #{tpu_custom_call.1} parent=0
    _
  %s13 = ssub.s32 1, %s11
  %s14 = scalar_select 0, %s13, %s11
  $region1: #{tpu_custom_call.1} parent=0
    #allocation2 [shape = 'u8[8192]{0}', space=vmem, size = 0x2000, scoped, tag = 'input window, operand 1']
    #allocation3 [shape = 's32[2]{0}', space=sflag, size = 0x8, scoped, tag = 'scoped memory for tpu_custom_call.1']
    #allocation4 [shape = 's32[2]{0}', space=sflag, size = 0x8, scoped, tag = 'scoped memory for tpu_custom_call.1']
    #allocation5 [shape = 'u8[8192]{0}', space=vmem, size = 0x2000, scoped, tag = 'input window, operand 2']
    #allocation6 [shape = 's32[2]{0}', space=sflag, size = 0x8, scoped, tag = 'scoped memory for tpu_custom_call.1']
    #allocation7 [shape = 'u8[4096]{0}', space=vmem, size = 0x1000, scoped, tag = 'input window, operand 6']
    #allocation8 [shape = 'u8[8192]{0}', space=vmem, size = 0x2000, scoped, tag = 'output window, operand 0']
    #allocation9 [shape = 'u8[8192]{0}', space=vmem, size = 0x2000, scoped, tag = 'output window, operand 1']
    #allocation10 [shape = 's32[2]{0}', space=sflag, size = 0x8, scoped, tag = 'scoped memory for tpu_custom_call.1']
    %15 = vsyncpa [#allocation3], 0
    %s16 = scalar_lea.sflag [#allocation3], 1
    %17 = vsyncpa %s16, 0
    %18 = vsyncpa [#allocation6], 0
    %s19 = scalar_lea.sflag [#allocation6], 1
    %20 = vsyncpa %s19, 0
    %21 = vsyncpa [#allocation4], 0
    %s22 = scalar_lea.sflag [#allocation4], 1
    %23 = vsyncpa %s22, 0
    %24 = vsyncpa [#allocation10], 0
    %s25 = scalar_lea.sflag [#allocation10], 1
    %26 = vsyncpa %s25, 0
    loop: start=0, step=1, limit=4
    $region2: #{tpu_custom_call.1} parent=1 // loop_pre_header
      _
    $region3: #{tpu_custom_call.1} parent=1 // loop_header
      %s28 = sphi 0, %s32
      %p29 = scmp.ge.s32.totalorder %s28, 4
      %s35 = sphi 0, %s47
      %s36 = sphi 0, %s43
      %s37 = sphi 0, %s35
      %s38 = sphi 0, %s36
      %s39 = sphi 0, %s37
      %s40 = sphi 0, %s38
      %s52 = sphi 0, %s54
      %s55 = sphi 0, %s52
      %s56 = sphi 0, %s55
      %s72 = sphi 0, %s56
      %s80 = sphi 0, %s82
      %s83 = sphi 0, %s80
      %s84 = sphi 0, %s83
      %s100 = sphi 0, %s84
      %s108 = sphi 0, %s110
      %s111 = sphi 0, %s108
      %s112 = sphi 0, %s111
      %s128 = sphi 0, %s112
      %s134 = sphi 0, %s136
      %s137 = sphi 0, %s134
      %s138 = sphi 0, %s137
      %s154 = sphi 0, %s138
      %s160 = sphi 0, %s162
      %s163 = sphi 0, %s160
      %s164 = sphi 0, %s163
      %s180 = sphi 0, %s164
      %s186 = sphi 0, %s188
      %s189 = sphi 0, %s186
      %s190 = sphi 0, %s189
      %s206 = sphi 0, %s190
      %s212 = sphi 0, %s214
      %s215 = sphi 0, %s212
      %s216 = sphi 0, %s215
      %s232 = sphi 0, %s216
      %s238 = sphi 0, %s240
      %s241 = sphi 0, %s238
      %s242 = sphi 0, %s241
      %s258 = sphi 0, %s242
      %s266 = sphi 0, %s268
      %s269 = sphi 0, %s266
      %s270 = sphi 0, %s269
      %s286 = sphi 0, %s270
      %s294 = sphi 0, %s296
      %s297 = sphi 0, %s294
      %s298 = sphi 0, %s297
      %s314 = sphi 0, %s298
    $region4: #{tpu_custom_call.1} parent=1 // loop_header_branch
      %31 = sbr.rel (%p29) target = $region8
    $region5: #{tpu_custom_call.1} parent=1 // loop_body
      %s33 = ssub.s32 %s28, 1
      %s34 = ssub.s32 %s28, 2
      %s41 = sadd.s32 1, %s36
      %p42 = scmp.ge.s32.totalorder %s41, 1
      %s43 = scalar_select %p42, 0, %s41
      %s44 = sadd.s32 1, %s35
      %s45 = scalar_select %p42, %s44, %s35
      %p46 = scmp.ge.s32.totalorder %s45, 2
      %s47 = scalar_select %p46, 0, %s45
      %s48 = ssub.s32 %s35, %s47
      %s49 = ssub.s32 %s36, %s43
      %s50 = sor.u32 %s48, %s49
      %p51 = scmp.eq.s32.totalorder %s50, 0
      %s53 = sadd.s32 %s52, 1
      %s54 = scalar_select %p51, %s52, %s53
      %p57 = pneg %p51
      %p58 = scmp.eq.s32.totalorder %s28, 1
      %p59 = por %p57, %p58
      %p60 = scmp.ne.s32.totalorder %s52, %s55
      %p61 = scmp.eq.s32.totalorder %s28, 0
      %p62 = por %p60, %p61
      %p63 = scmp.ne.s32.totalorder %s52, %s55
      %p64 = scmp.eq.s32.totalorder %s33, 1
      %p65 = por %p63, %p64
      %p66 = scmp.ne.s32.totalorder %s55, %s56
      %p67 = scmp.eq.s32.totalorder %s33, 0
      %p68 = por %p66, %p67
      %p69 = scmp.ne.s32.totalorder %s55, %s56
      %p70 = scmp.eq.s32.totalorder %s34, 1
      %p71 = por %p69, %p70
      %p73 = scmp.ne.s32.totalorder %s56, %s72
      %p74 = scmp.eq.s32.totalorder %s34, 0
      %p75 = por %p73, %p74
      %s76 = ssub.s32 %s35, %s47
      %s77 = ssub.s32 %s36, %s43
      %s78 = sor.u32 %s76, %s77
      %p79 = scmp.eq.s32.totalorder %s78, 0
      %s81 = sadd.s32 %s80, 1
      %s82 = scalar_select %p79, %s80, %s81
      %p85 = pneg %p79
      %p86 = scmp.eq.s32.totalorder %s28, 1
      %p87 = por %p85, %p86
      %p88 = scmp.ne.s32.totalorder %s80, %s83
      %p89 = scmp.eq.s32.totalorder %s28, 0
      %p90 = por %p88, %p89
      %p91 = scmp.ne.s32.totalorder %s80, %s83
      %p92 = scmp.eq.s32.totalorder %s33, 1
      %p93 = por %p91, %p92
      %p94 = scmp.ne.s32.totalorder %s83, %s84
      %p95 = scmp.eq.s32.totalorder %s33, 0
      %p96 = por %p94, %p95
      %p97 = scmp.ne.s32.totalorder %s83, %s84
      %p98 = scmp.eq.s32.totalorder %s34, 1
      %p99 = por %p97, %p98
      %p101 = scmp.ne.s32.totalorder %s84, %s100
      %p102 = scmp.eq.s32.totalorder %s34, 0
      %p103 = por %p101, %p102
      %s104 = ssub.s32 %s35, %s47
      %s105 = ssub.s32 %s36, %s43
      %s106 = sor.u32 %s104, %s105
      %p107 = scmp.eq.s32.totalorder %s106, 0
      %s109 = sadd.s32 %s108, 1
      %s110 = scalar_select %p107, %s108, %s109
      %p113 = pneg %p107
      %p114 = scmp.eq.s32.totalorder %s28, 1
      %p115 = por %p113, %p114
      %p116 = scmp.ne.s32.totalorder %s108, %s111
      %p117 = scmp.eq.s32.totalorder %s28, 0
      %p118 = por %p116, %p117
      %p119 = scmp.ne.s32.totalorder %s108, %s111
      %p120 = scmp.eq.s32.totalorder %s33, 1
      %p121 = por %p119, %p120
      %p122 = scmp.ne.s32.totalorder %s111, %s112
      %p123 = scmp.eq.s32.totalorder %s33, 0
      %p124 = por %p122, %p123
      %p125 = scmp.ne.s32.totalorder %s111, %s112
      %p126 = scmp.eq.s32.totalorder %s34, 1
      %p127 = por %p125, %p126
      %p129 = scmp.ne.s32.totalorder %s112, %s128
      %p130 = scmp.eq.s32.totalorder %s34, 0
      %p131 = por %p129, %p130
      %s132 = ssub.s32 %s35, %s47
      %p133 = scmp.eq.s32.totalorder %s132, 0
      %s135 = sadd.s32 %s134, 1
      %s136 = scalar_select %p133, %s134, %s135
      %p139 = pneg %p133
      %p140 = scmp.eq.s32.totalorder %s28, 1
      %p141 = por %p139, %p140
      %p142 = scmp.ne.s32.totalorder %s134, %s137
      %p143 = scmp.eq.s32.totalorder %s28, 0
      %p144 = por %p142, %p143
      %p145 = scmp.ne.s32.totalorder %s134, %s137
      %p146 = scmp.eq.s32.totalorder %s33, 1
      %p147 = por %p145, %p146
      %p148 = scmp.ne.s32.totalorder %s137, %s138
      %p149 = scmp.eq.s32.totalorder %s33, 0
      %p150 = por %p148, %p149
      %p151 = scmp.ne.s32.totalorder %s137, %s138
      %p152 = scmp.eq.s32.totalorder %s34, 1
      %p153 = por %p151, %p152
      %p155 = scmp.ne.s32.totalorder %s138, %s154
      %p156 = scmp.eq.s32.totalorder %s34, 0
      %p157 = por %p155, %p156
      %s158 = ssub.s32 %s35, %s47
      %p159 = scmp.eq.s32.totalorder %s158, 0
      %s161 = sadd.s32 %s160, 1
      %s162 = scalar_select %p159, %s160, %s161
      %p165 = pneg %p159
      %p166 = scmp.eq.s32.totalorder %s28, 1
      %p167 = por %p165, %p166
      %p168 = scmp.ne.s32.totalorder %s160, %s163
      %p169 = scmp.eq.s32.totalorder %s28, 0
      %p170 = por %p168, %p169
      %p171 = scmp.ne.s32.totalorder %s160, %s163
      %p172 = scmp.eq.s32.totalorder %s33, 1
      %p173 = por %p171, %p172
      %p174 = scmp.ne.s32.totalorder %s163, %s164
      %p175 = scmp.eq.s32.totalorder %s33, 0
      %p176 = por %p174, %p175
      %p177 = scmp.ne.s32.totalorder %s163, %s164
      %p178 = scmp.eq.s32.totalorder %s34, 1
      %p179 = por %p177, %p178
      %p181 = scmp.ne.s32.totalorder %s164, %s180
      %p182 = scmp.eq.s32.totalorder %s34, 0
      %p183 = por %p181, %p182
      %s184 = ssub.s32 %s35, %s47
      %p185 = scmp.eq.s32.totalorder %s184, 0
      %s187 = sadd.s32 %s186, 1
      %s188 = scalar_select %p185, %s186, %s187
      %p191 = pneg %p185
      %p192 = scmp.eq.s32.totalorder %s28, 1
      %p193 = por %p191, %p192
      %p194 = scmp.ne.s32.totalorder %s186, %s189
      %p195 = scmp.eq.s32.totalorder %s28, 0
      %p196 = por %p194, %p195
      %p197 = scmp.ne.s32.totalorder %s186, %s189
      %p198 = scmp.eq.s32.totalorder %s33, 1
      %p199 = por %p197, %p198
      %p200 = scmp.ne.s32.totalorder %s189, %s190
      %p201 = scmp.eq.s32.totalorder %s33, 0
      %p202 = por %p200, %p201
      %p203 = scmp.ne.s32.totalorder %s189, %s190
      %p204 = scmp.eq.s32.totalorder %s34, 1
      %p205 = por %p203, %p204
      %p207 = scmp.ne.s32.totalorder %s190, %s206
      %p208 = scmp.eq.s32.totalorder %s34, 0
      %p209 = por %p207, %p208
      %s210 = ssub.s32 %s35, %s47
      %p211 = scmp.eq.s32.totalorder %s210, 0
      %s213 = sadd.s32 %s212, 1
      %s214 = scalar_select %p211, %s212, %s213
      %p217 = pneg %p211
      %p218 = scmp.eq.s32.totalorder %s28, 1
      %p219 = por %p217, %p218
      %p220 = scmp.ne.s32.totalorder %s212, %s215
      %p221 = scmp.eq.s32.totalorder %s28, 0
      %p222 = por %p220, %p221
      %p223 = scmp.ne.s32.totalorder %s212, %s215
      %p224 = scmp.eq.s32.totalorder %s33, 1
      %p225 = por %p223, %p224
      %p226 = scmp.ne.s32.totalorder %s215, %s216
      %p227 = scmp.eq.s32.totalorder %s33, 0
      %p228 = por %p226, %p227
      %p229 = scmp.ne.s32.totalorder %s215, %s216
      %p230 = scmp.eq.s32.totalorder %s34, 1
      %p231 = por %p229, %p230
      %p233 = scmp.ne.s32.totalorder %s216, %s232
      %p234 = scmp.eq.s32.totalorder %s34, 0
      %p235 = por %p233, %p234
      %s236 = ssub.s32 %s35, %s47
      %p237 = scmp.eq.s32.totalorder %s236, 0
      %s239 = sadd.s32 %s238, 1
      %s240 = scalar_select %p237, %s238, %s239
      %p243 = pneg %p237
      %p244 = scmp.eq.s32.totalorder %s28, 1
      %p245 = por %p243, %p244
      %p246 = scmp.ne.s32.totalorder %s238, %s241
      %p247 = scmp.eq.s32.totalorder %s28, 0
      %p248 = por %p246, %p247
      %p249 = scmp.ne.s32.totalorder %s238, %s241
      %p250 = scmp.eq.s32.totalorder %s33, 1
      %p251 = por %p249, %p250
      %p252 = scmp.ne.s32.totalorder %s241, %s242
      %p253 = scmp.eq.s32.totalorder %s33, 0
      %p254 = por %p252, %p253
      %p255 = scmp.ne.s32.totalorder %s241, %s242
      %p256 = scmp.eq.s32.totalorder %s34, 1
      %p257 = por %p255, %p256
      %p259 = scmp.ne.s32.totalorder %s242, %s258
      %p260 = scmp.eq.s32.totalorder %s34, 0
      %p261 = por %p259, %p260
      %s262 = ssub.s32 %s35, %s47
      %s263 = ssub.s32 %s36, %s43
      %s264 = sor.u32 %s262, %s263
      %p265 = scmp.eq.s32.totalorder %s264, 0
      %s267 = sadd.s32 %s266, 1
      %s268 = scalar_select %p265, %s266, %s267
      %p271 = pneg %p265
      %p272 = scmp.eq.s32.totalorder %s28, 1
      %p273 = por %p271, %p272
      %p274 = scmp.ne.s32.totalorder %s266, %s269
      %p275 = scmp.eq.s32.totalorder %s28, 0
      %p276 = por %p274, %p275
      %p277 = scmp.ne.s32.totalorder %s266, %s269
      %p278 = scmp.eq.s32.totalorder %s33, 1
      %p279 = por %p277, %p278
      %p280 = scmp.ne.s32.totalorder %s269, %s270
      %p281 = scmp.eq.s32.totalorder %s33, 0
      %p282 = por %p280, %p281
      %p283 = scmp.ne.s32.totalorder %s269, %s270
      %p284 = scmp.eq.s32.totalorder %s34, 1
      %p285 = por %p283, %p284
      %p287 = scmp.ne.s32.totalorder %s270, %s286
      %p288 = scmp.eq.s32.totalorder %s34, 0
      %p289 = por %p287, %p288
      %s290 = ssub.s32 %s35, %s47
      %s291 = ssub.s32 %s36, %s43
      %s292 = sor.u32 %s290, %s291
      %p293 = scmp.eq.s32.totalorder %s292, 0
      %s295 = sadd.s32 %s294, 1
      %s296 = scalar_select %p293, %s294, %s295
      %p299 = pneg %p293
      %p300 = scmp.eq.s32.totalorder %s28, 1
      %p301 = por %p299, %p300
      %p302 = scmp.ne.s32.totalorder %s294, %s297
      %p303 = scmp.eq.s32.totalorder %s28, 0
      %p304 = por %p302, %p303
      %p305 = scmp.ne.s32.totalorder %s294, %s297
      %p306 = scmp.eq.s32.totalorder %s33, 1
      %p307 = por %p305, %p306
      %p308 = scmp.ne.s32.totalorder %s297, %s298
      %p309 = scmp.eq.s32.totalorder %s33, 0
      %p310 = por %p308, %p309
      %p311 = scmp.ne.s32.totalorder %s297, %s298
      %p312 = scmp.eq.s32.totalorder %s34, 1
      %p313 = por %p311, %p312
      %p315 = scmp.ne.s32.totalorder %s298, %s314
      %p316 = scmp.eq.s32.totalorder %s34, 0
      %p317 = por %p315, %p316
      %p318 = scmp.le.s32.totalorder 1, %s28
      %p319 = scmp.lt.s32.totalorder %s28, 3
      %p320 = pnand %p318, %p319
      %p321 = pneg %p320
      // Predicated region
      $region9: #{tpu_custom_call.1} parent=5 // pred_check
        _
      $region10: #{tpu_custom_call.1} parent=5 // pred_check_branch
        %323 = sbr.rel (%p320) target = $region12
      $region11: #{tpu_custom_call.1} parent=5 // pred_region
        %s324 = ssub.s32 %s28, 1
      $region12: #{tpu_custom_call.1} parent=5 // pred_fallthru
        _
      %p325 = scmp.lt.s32.totalorder %s28, 2
      // Predicated region
      $region13: #{tpu_custom_call.1} parent=5 // pred_check
        %p326 = pneg %p325
      $region14: #{tpu_custom_call.1} parent=5 // pred_check_branch
        %328 = sbr.rel (%p326) target = $region16
      $region15: #{tpu_custom_call.1} parent=5 // pred_region
        // Predicated region
        $region17: #{tpu_custom_call.1} parent=15 // pred_check
          %p329 = pneg %p62
        $region18: #{tpu_custom_call.1} parent=15 // pred_check_branch
          %331 = sbr.rel (%p329) target = $region20
        $region19: #{tpu_custom_call.1} parent=15 // pred_region
          %s332 = smul.u32 2, %s36
          %p333 = scmp.lt.s32.totalorder %s35, 1
          %s334 = scalar_select %p333, %s35, 1
          %p335 = scmp.lt.s32.totalorder %s332, 1
          %s336 = scalar_select %p335, %s332, 1
          %s337 = smul.addr %s334, 2
          %s338 = sadd.s32 %s336, %s337
          %s339 = smul.addr %s338, 4
          %s340 = scalar_lea.vmem %s0, %s339
          %s341 = smul.u32 2, %s36
        $region20: #{tpu_custom_call.1} parent=15 // pred_fallthru
          _
        // Predicated region
        $region21: #{tpu_custom_call.1} parent=15 // pred_check
          %p342 = pneg %p90
        $region22: #{tpu_custom_call.1} parent=15 // pred_check_branch
          %344 = sbr.rel (%p342) target = $region24
        $region23: #{tpu_custom_call.1} parent=15 // pred_region
          %s345 = sand.u32 %s80, 1
          %s346 = scalar_lea.sflag [#allocation3], %s345
          %s347 = sand.u32 %s80, 1
          %s348 = smul.addr %s347, 8
          %s349 = scalar_lea.vmem [#allocation2], %s348
          %s350 = smul.u32 2, %s36
          %s352 = ssub.s32 128, 128
          %353 = vsyncadd %s346, %s352
          %s354 = smul.addr %s35, 2
          %s355 = sadd.s32 %s350, %s354
          %s356 = smul.addr %s355, 64
          %s357 = scalar_lea.hbm %s1, %s356
          %s359 = sshll.u32 %s349, 4
          %s360 = int_to_ptr.vmem [resolvable:$true] %s359
          %362 = dma.hbm_to_vmem [thread:$0]  %s357, 128, %s360, %s346
        $region24: #{tpu_custom_call.1} parent=15 // pred_fallthru
          _
        // Predicated region
        $region25: #{tpu_custom_call.1} parent=15 // pred_check
          %p363 = pneg %p118
        $region26: #{tpu_custom_call.1} parent=15 // pred_check_branch
          %365 = sbr.rel (%p363) target = $region28
        $region27: #{tpu_custom_call.1} parent=15 // pred_region
          %s366 = sand.u32 %s28, 1
          %s367 = scalar_lea.sflag [#allocation6], %s366
          %s368 = sand.u32 %s108, 1
          %s369 = smul.addr %s368, 8
          %s370 = scalar_lea.vmem [#allocation5], %s369
          %s371 = smul.u32 2, %s36
          %s373 = ssub.s32 128, 128
          %374 = vsyncadd %s367, %s373
          %s375 = smul.addr %s35, 2
          %s376 = sadd.s32 %s371, %s375
          %s377 = smul.addr %s376, 64
          %s378 = scalar_lea.hbm %s2, %s377
          %s380 = sshll.u32 %s370, 4
          %s381 = int_to_ptr.vmem [resolvable:$true] %s380
          %383 = dma.hbm_to_vmem [thread:$0]  %s378, 128, %s381, %s367
        $region28: #{tpu_custom_call.1} parent=15 // pred_fallthru
          _
        // Predicated region
        $region29: #{tpu_custom_call.1} parent=15 // pred_check
          %p384 = pneg %p144
        $region30: #{tpu_custom_call.1} parent=15 // pred_check_branch
          %386 = sbr.rel (%p384) target = $region32
        $region31: #{tpu_custom_call.1} parent=15 // pred_region
          %p387 = scmp.lt.s32.totalorder %s35, 1
          %s388 = scalar_select %p387, %s35, 1
          %s389 = scalar_lea.vmem %s3, %s388
        $region32: #{tpu_custom_call.1} parent=15 // pred_fallthru
          _
        // Predicated region
        $region33: #{tpu_custom_call.1} parent=15 // pred_check
          %p390 = pneg %p170
        $region34: #{tpu_custom_call.1} parent=15 // pred_check_branch
          %392 = sbr.rel (%p390) target = $region36
        $region35: #{tpu_custom_call.1} parent=15 // pred_region
          %p393 = scmp.lt.s32.totalorder %s35, 1
          %s394 = scalar_select %p393, %s35, 1
          %s395 = scalar_lea.vmem %s4, %s394
        $region36: #{tpu_custom_call.1} parent=15 // pred_fallthru
          _
        // Predicated region
        $region37: #{tpu_custom_call.1} parent=15 // pred_check
          %p396 = pneg %p196
        $region38: #{tpu_custom_call.1} parent=15 // pred_check_branch
          %398 = sbr.rel (%p396) target = $region40
        $region39: #{tpu_custom_call.1} parent=15 // pred_region
          %p399 = scmp.lt.s32.totalorder %s35, 1
          %s400 = scalar_select %p399, %s35, 1
          %s401 = smul.addr %s400, 4
          %s402 = scalar_lea.vmem %s5, %s401
        $region40: #{tpu_custom_call.1} parent=15 // pred_fallthru
          _
        // Predicated region
        $region41: #{tpu_custom_call.1} parent=15 // pred_check
          %p403 = pneg %p222
        $region42: #{tpu_custom_call.1} parent=15 // pred_check_branch
          %405 = sbr.rel (%p403) target = $region44
        $region43: #{tpu_custom_call.1} parent=15 // pred_region
          %s406 = sand.u32 %s28, 1
          %s407 = scalar_lea.sflag [#allocation6], %s406
          %s408 = sand.u32 %s212, 1
          %s409 = smul.addr %s408, 4
          %s410 = scalar_lea.vmem [#allocation7], %s409
          %s412 = ssub.s32 64, 64
          %413 = vsyncadd %s407, %s412
          %s414 = smul.addr %s35, 64
          %s415 = scalar_lea.hbm %s6, %s414
          %s417 = sshll.u32 %s410, 4
          %s418 = int_to_ptr.vmem [resolvable:$true] %s417
          %420 = dma.hbm_to_vmem [thread:$0]  %s415, 64, %s418, %s407
        $region44: #{tpu_custom_call.1} parent=15 // pred_fallthru
          _
        // Predicated region
        $region45: #{tpu_custom_call.1} parent=15 // pred_check
          %p421 = pneg %p248
        $region46: #{tpu_custom_call.1} parent=15 // pred_check_branch
          %423 = sbr.rel (%p421) target = $region48
        $region47: #{tpu_custom_call.1} parent=15 // pred_region
          %p424 = scmp.lt.s32.totalorder %s35, 1
          %s425 = scalar_select %p424, %s35, 1
          %s426 = smul.addr %s425, 4
          %s427 = scalar_lea.vmem %s7, %s426
        $region48: #{tpu_custom_call.1} parent=15 // pred_fallthru
          _
      $region16: #{tpu_custom_call.1} parent=5 // pred_fallthru
        _
      %p428 = scmp.le.s32.totalorder 1, %s28
      %p429 = scmp.lt.s32.totalorder %s28, 3
      %p430 = pnand %p428, %p429
      %p431 = pneg %p430
      // Predicated region
      $region49: #{tpu_custom_call.1} parent=5 // pred_check
        _
      $region50: #{tpu_custom_call.1} parent=5 // pred_check_branch
        %433 = sbr.rel (%p430) target = $region52
      $region51: #{tpu_custom_call.1} parent=5 // pred_region
        %s434 = ssub.s32 %s28, 1
        %s435 = sand.u32 %s83, 1
        %s436 = scalar_lea.sflag [#allocation3], %s435
        %s437 = sand.u32 %s83, 1
        %s438 = smul.addr %s437, 8
        %s439 = scalar_lea.vmem [#allocation2], %s438
        // Predicated region
        $region53: #{tpu_custom_call.1} parent=51 // pred_check
          %p440 = pneg %p96
        $region54: #{tpu_custom_call.1} parent=51 // pred_check_branch
          %442 = sbr.rel (%p440) target = $region56
        $region55: #{tpu_custom_call.1} parent=51 // pred_region
          %443 = dma.done %s436, 128
        $region56: #{tpu_custom_call.1} parent=51 // pred_fallthru
          _
        %s444 = sand.u32 %s33, 1
        %s445 = scalar_lea.sflag [#allocation6], %s444
        %s446 = sand.u32 %s111, 1
        %s447 = smul.addr %s446, 8
        %s448 = scalar_lea.vmem [#allocation5], %s447
        // Predicated region
        $region57: #{tpu_custom_call.1} parent=51 // pred_check
          %p449 = pneg %p124
        $region58: #{tpu_custom_call.1} parent=51 // pred_check_branch
          %451 = sbr.rel (%p449) target = $region60
        $region59: #{tpu_custom_call.1} parent=51 // pred_region
          %452 = dma.done %s445, 128
        $region60: #{tpu_custom_call.1} parent=51 // pred_fallthru
          _
        %s453 = sand.u32 %s33, 1
        %s454 = scalar_lea.sflag [#allocation6], %s453
        %s455 = sand.u32 %s215, 1
        %s456 = smul.addr %s455, 4
        %s457 = scalar_lea.vmem [#allocation7], %s456
        // Predicated region
        $region61: #{tpu_custom_call.1} parent=51 // pred_check
          %p458 = pneg %p228
        $region62: #{tpu_custom_call.1} parent=51 // pred_check_branch
          %460 = sbr.rel (%p458) target = $region64
        $region63: #{tpu_custom_call.1} parent=51 // pred_region
          %461 = dma.done %s454, 64
        $region64: #{tpu_custom_call.1} parent=51 // pred_fallthru
          _
        %s462 = smul.u32 2, %s38
        %p463 = scmp.lt.s32.totalorder %s37, 1
        %s464 = scalar_select %p463, %s37, 1
        %p465 = scmp.lt.s32.totalorder %s462, 1
        %s466 = scalar_select %p465, %s462, 1
        %s467 = smul.addr %s464, 2
        %s468 = sadd.s32 %s466, %s467
        %s469 = smul.addr %s468, 4
        %s470 = scalar_lea.vmem %s0, %s469
        %p471 = pneg %p68
        %p472 = pneg %p65
        %s473 = sand.u32 %s83, 1
        %s474 = scalar_lea.sflag [#allocation3], %s473
        %s475 = sand.u32 %s83, 1
        %s476 = smul.addr %s475, 8
        %s477 = scalar_lea.vmem [#allocation2], %s476
        %p478 = pneg %p96
        %p479 = pneg %p93
        %s480 = sand.u32 %s33, 1
        %s481 = scalar_lea.sflag [#allocation6], %s480
        %s482 = sand.u32 %s111, 1
        %s483 = smul.addr %s482, 8
        %s484 = scalar_lea.vmem [#allocation5], %s483
        %p485 = pneg %p124
        %p486 = pneg %p121
        %p487 = scmp.lt.s32.totalorder %s37, 1
        %s488 = scalar_select %p487, %s37, 1
        %s489 = scalar_lea.vmem %s3, %s488
        %p490 = pneg %p150
        %p491 = pneg %p147
        %p492 = scmp.lt.s32.totalorder %s37, 1
        %s493 = scalar_select %p492, %s37, 1
        %s494 = scalar_lea.vmem %s4, %s493
        %p495 = pneg %p176
        %p496 = pneg %p173
        %p497 = scmp.lt.s32.totalorder %s37, 1
        %s498 = scalar_select %p497, %s37, 1
        %s499 = smul.addr %s498, 4
        %s500 = scalar_lea.vmem %s5, %s499
        %p501 = pneg %p202
        %p502 = pneg %p199
        %s503 = sand.u32 %s33, 1
        %s504 = scalar_lea.sflag [#allocation6], %s503
        %s505 = sand.u32 %s215, 1
        %s506 = smul.addr %s505, 4
        %s507 = scalar_lea.vmem [#allocation7], %s506
        %p508 = pneg %p228
        %p509 = pneg %p225
        %p510 = scmp.lt.s32.totalorder %s37, 1
        %s511 = scalar_select %p510, %s37, 1
        %s512 = smul.addr %s511, 4
        %s513 = scalar_lea.vmem %s7, %s512
        %p514 = pneg %p254
        %p515 = pneg %p251
        %p516 = pneg %p282
        %p517 = pneg %p279
        %s518 = sand.u32 %s269, 1
        %s519 = scalar_lea.sflag [#allocation4], %s518
        %s520 = sand.u32 %s269, 1
        %s521 = smul.addr %s520, 8
        %s522 = scalar_lea.vmem [#allocation8], %s521
        %p523 = pneg %p310
        %p524 = pneg %p307
        %s525 = sand.u32 %s297, 1
        %s526 = scalar_lea.sflag [#allocation10], %s525
        %s527 = sand.u32 %s297, 1
        %s528 = smul.addr %s527, 8
        %s529 = scalar_lea.vmem [#allocation9], %s528
        %s530 = smul.u32 2, %s38
        %p531 = scmp.lt.s32.totalorder %s37, 1
        %s532 = scalar_select %p531, %s37, 1
        %p533 = scmp.lt.s32.totalorder %s530, 1
        %s534 = scalar_select %p533, %s530, 1
        %s535 = smul.addr %s532, 2
        %s536 = sadd.s32 %s534, %s535
        %s537 = smul.addr %s536, 4
        %s538 = scalar_lea.vmem %s0, %s537
        %s539 = smul.u32 2, %s38
        %s540 = smul.u32 2, %s38
        %s541 = smul.u32 2, %s38
        %p542 = scmp.lt.s32.totalorder %s37, 1
        %s543 = scalar_select %p542, %s37, 1
        %s544 = scalar_lea.vmem %s3, %s543
        %p545 = scmp.lt.s32.totalorder %s37, 1
        %s546 = scalar_select %p545, %s37, 1
        %s547 = scalar_lea.vmem %s4, %s546
        %p548 = scmp.lt.s32.totalorder %s37, 1
        %s549 = scalar_select %p548, %s37, 1
        %s550 = smul.addr %s549, 4
        %s551 = scalar_lea.vmem %s5, %s550
        %p552 = scmp.lt.s32.totalorder %s37, 1
        %s553 = scalar_select %p552, %s37, 1
        %s554 = smul.addr %s553, 4
        %s555 = scalar_lea.vmem %s7, %s554
        %s556 = smul.u32 2, %s38
        %v557 = vld [vmem:[%s448] sm:$0xff]
        %v558 = vld [vmem:[%s544] sm:$0x1]
        %v559 = vld [vmem:[%s538] sm:$0xff]
        %v561 = vlaneseq
        %v562 = vshrl.u32 %v561, 7
        %v563 = vsub.s32 0, %v562
        %v564 = vrot.slane %v558, %v563
        %565 = vset.pattern.permute.xlu0 0
        %566 = vperm.xlu0 %565, %v564
        %v567 = vpop.permute.xlu0 %566
        %v569 = vmul.f32 %v567, %v559
        %v570 = vld [vmem:[%s547] sm:$0x1]
        %v572 = vlaneseq
        %v573 = vshrl.u32 %v572, 7
        %v574 = vsub.s32 0, %v573
        %v575 = vrot.slane %v570, %v574
        %576 = vset.pattern.permute.xlu0 0
        %577 = vperm.xlu0 %576, %v575
        %v578 = vpop.permute.xlu0 %577
        %v580 = vmul.f32 %v578, %v557
        %v581 = vadd.f32 %v569, %v580
        %v582 = vld [vmem:[%s551] sm:$0xf]
        %v583 = vld [vmem:[%s457] sm:$0xf]
        %v584 = vld [vmem:[%s439] sm:$0xff]
        %v586 = vcombine.high %v584, %v584
        %vm587 = vcmask 31744
        %v589 = vsel %vm587, %v583, 0
        %vm591 = vcmask 1043456
        %v592 = vsel %vm591, %v584, 0
        %v594 = vsel %vm591, %v586, 0
        %596 = vmatprep.subr.mxu0 0.0
        %597 = vmatpush1.msra.mxu0 0.0
        %598 = vmatprep.subr.mxu0 0.0
        %599 = vmatpush1.msra.mxu0 0.0
        %600 = vmatprep.subr.mxu0 0.0
        %601 = vmatpush1.msra.mxu0 0.0
        %602 = vmatprep.subr.mxu0 0.0
        %603 = vmatpush1.msra.mxu0 0.0
        %604 = vmatprep.subr.mxu0 0.0
        %605 = vmatpush1.msra.mxu0 0.0
        %606 = vmatprep.subr.mxu0 0.0
        %607 = vmatpush1.msra.mxu0 0.0
        %608 = vmatprep.subr.mxu0 0.0
        %609 = vmatpush1.msra.mxu0 0.0
        %610 = vmatprep.subr.mxu0 0.0
        %611 = vmatpush1.msra.mxu0 0.0
        %612 = vmatprep.subr.mxu0 0.0
        %613 = vmatpush1.msra.mxu0 0.0
        %614 = vmatprep.subr.mxu0 0.0
        %615 = vmatpush1.msra.mxu0 0.0
        %616 = vmatprep.subr.mxu0 0.0
        %617 = vmatpush1.msra.mxu0 0.0
        %618 = vmatprep.subr.mxu0 0.0
        %619 = vmatpush1.msra.mxu0 0.0
        %620 = vmatprep.subr.mxu0 0.0
        %621 = vmatpush1.msra.mxu0 0.0
        %622 = vmatprep.subr.mxu0 0.0
        %623 = vmatpush1.msra.mxu0 0.0
        %624 = vmatprep.subr.mxu0 0.0
        %625 = vmatpush1.msra.mxu0 0.0
        %626 = vmatprep.subr.mxu0 %v594
        %627 = vmatpush1.msra.mxu0 %v592
        %628 = vmatprep.subr.mxu0 0.0
        %629 = vmatpush2.msra.mxu0 0.0
        %630 = vmatprep.subr.mxu0 0.0
        %631 = vmatpush2.msra.mxu0 0.0
        %632 = vmatprep.subr.mxu0 0.0
        %633 = vmatpush2.msra.mxu0 0.0
        %634 = vmatprep.subr.mxu0 0.0
        %635 = vmatpush2.msra.mxu0 0.0
        %636 = vmatprep.subr.mxu0 0.0
        %637 = vmatpush2.msra.mxu0 0.0
        %638 = vmatprep.subr.mxu0 0.0
        %639 = vmatpush2.msra.mxu0 0.0
        %640 = vmatprep.subr.mxu0 0.0
        %641 = vmatpush2.msra.mxu0 0.0
        %642 = vmatprep.subr.mxu0 0.0
        %643 = vmatpush2.msra.mxu0 0.0
        %644 = vmatprep.subr.mxu0 0.0
        %645 = vmatpush2.msra.mxu0 0.0
        %646 = vmatprep.subr.mxu0 0.0
        %647 = vmatpush2.msra.mxu0 0.0
        %648 = vmatprep.subr.mxu0 0.0
        %649 = vmatpush2.msra.mxu0 0.0
        %650 = vmatprep.subr.mxu0 0.0
        %651 = vmatpush2.msra.mxu0 0.0
        %652 = vmatprep.subr.mxu0 0.0
        %653 = vmatpush2.msra.mxu0 0.0
        %654 = vmatprep.subr.mxu0 0.0
        %655 = vmatpush2.msra.mxu0 0.0
        %656 = vmatprep.subr.mxu0 0.0
        %657 = vmatpush2.msra.mxu0 0.0
        %658 = vmatprep.subr.mxu0 0.0
        %659 = vmatpush2.msra.mxu0 0.0
        %660 = vmatprep.mubr.f32.mxu0 0.0
        %661 = vmatmul.mubr.f32.gmra.mxu0 %v589
        %v662 = vpop.f32.mrf.mxu0
        %v663 = vadd.f32 0.0, %v662
        %v664 = vpop.f32.mrf.mxu0
        %v665 = vadd.f32 0.0, %v664
        %666 = vdwg.mxu0
        %v668 = vcombine.high %v581, %v581
        %v670 = vsel %vm587, %v582, 0
        %v672 = vsel %vm591, %v581, 0
        %v674 = vsel %vm591, %v668, 0
        %676 = vmatprep.subr.mxu0 0.0
        %677 = vmatpush1.msra.mxu0 0.0
        %678 = vmatprep.subr.mxu0 0.0
        %679 = vmatpush1.msra.mxu0 0.0
        %680 = vmatprep.subr.mxu0 0.0
        %681 = vmatpush1.msra.mxu0 0.0
        %682 = vmatprep.subr.mxu0 0.0
        %683 = vmatpush1.msra.mxu0 0.0
        %684 = vmatprep.subr.mxu0 0.0
        %685 = vmatpush1.msra.mxu0 0.0
        %686 = vmatprep.subr.mxu0 0.0
        %687 = vmatpush1.msra.mxu0 0.0
        %688 = vmatprep.subr.mxu0 0.0
        %689 = vmatpush1.msra.mxu0 0.0
        %690 = vmatprep.subr.mxu0 0.0
        %691 = vmatpush1.msra.mxu0 0.0
        %692 = vmatprep.subr.mxu0 0.0
        %693 = vmatpush1.msra.mxu0 0.0
        %694 = vmatprep.subr.mxu0 0.0
        %695 = vmatpush1.msra.mxu0 0.0
        %696 = vmatprep.subr.mxu0 0.0
        %697 = vmatpush1.msra.mxu0 0.0
        %698 = vmatprep.subr.mxu0 0.0
        %699 = vmatpush1.msra.mxu0 0.0
        %700 = vmatprep.subr.mxu0 0.0
        %701 = vmatpush1.msra.mxu0 0.0
        %702 = vmatprep.subr.mxu0 0.0
        %703 = vmatpush1.msra.mxu0 0.0
        %704 = vmatprep.subr.mxu0 0.0
        %705 = vmatpush1.msra.mxu0 0.0
        %706 = vmatprep.subr.mxu0 %v674
        %707 = vmatpush1.msra.mxu0 %v672
        %708 = vmatprep.subr.mxu0 0.0
        %709 = vmatpush2.msra.mxu0 0.0
        %710 = vmatprep.subr.mxu0 0.0
        %711 = vmatpush2.msra.mxu0 0.0
        %712 = vmatprep.subr.mxu0 0.0
        %713 = vmatpush2.msra.mxu0 0.0
        %714 = vmatprep.subr.mxu0 0.0
        %715 = vmatpush2.msra.mxu0 0.0
        %716 = vmatprep.subr.mxu0 0.0
        %717 = vmatpush2.msra.mxu0 0.0
        %718 = vmatprep.subr.mxu0 0.0
        %719 = vmatpush2.msra.mxu0 0.0
        %720 = vmatprep.subr.mxu0 0.0
        %721 = vmatpush2.msra.mxu0 0.0
        %722 = vmatprep.subr.mxu0 0.0
        %723 = vmatpush2.msra.mxu0 0.0
        %724 = vmatprep.subr.mxu0 0.0
        %725 = vmatpush2.msra.mxu0 0.0
        %726 = vmatprep.subr.mxu0 0.0
        %727 = vmatpush2.msra.mxu0 0.0
        %728 = vmatprep.subr.mxu0 0.0
        %729 = vmatpush2.msra.mxu0 0.0
        %730 = vmatprep.subr.mxu0 0.0
        %731 = vmatpush2.msra.mxu0 0.0
        %732 = vmatprep.subr.mxu0 0.0
        %733 = vmatpush2.msra.mxu0 0.0
        %734 = vmatprep.subr.mxu0 0.0
        %735 = vmatpush2.msra.mxu0 0.0
        %736 = vmatprep.subr.mxu0 0.0
        %737 = vmatpush2.msra.mxu0 0.0
        %738 = vmatprep.subr.mxu0 0.0
        %739 = vmatpush2.msra.mxu0 0.0
        %740 = vmatprep.mubr.f32.mxu0 0.0
        %741 = vmatmul.mubr.f32.gmra.mxu0 %v670
        %v742 = vpop.f32.mrf.mxu0
        %v743 = vadd.f32 %v663, %v742
        %v744 = vpop.f32.mrf.mxu0
        %v745 = vadd.f32 %v665, %v744
        %746 = vdwg.mxu0
        %v747 = vld [vmem:[%s555] sm:$0xf]
        %749 = vset.pattern.permute.xlu0 0
        %750 = vperm.xlu0 %749, %v747
        %v751 = vpop.permute.xlu0 %750
        %v753 = vadd.f32 %v743, %v751
        %v754 = vadd.f32 %v745, %v751
        %v757 = vcombine.low %v753, %v754
        %759 = vst [vmem:[%s522] sm:$0xff] %v757
        %v760 = vsub.f32 %v557, %v757
        %v761 = vmul.f32 %v760, %v760
        %v763 = vcombine.high %v761, %v761
        %v765 = vsel %vm591, %v761, 0.0
        %v766 = vsel %vm591, %v763, 0.0
        %v767 = vadd.f32 %v765, %v766
        %768 = vadd.xlane.f32.xlu0 %v767
        %v769 = vpop.xlane.xlu0 %768
        %v770 = vrot.slane %v769, 4
        %v771 = vadd.f32 %v769, %v770
        %v772 = vrot.slane %v771, 2
        %v773 = vadd.f32 %v771, %v772
        %v774 = vrot.slane %v773, 1
        %v775 = vadd.f32 %v773, %v774
        %s776 = vtos %v775
        %s777 = smul.f32 %s776, 0.0009765625
        %v778 = vstv %s777
        %v779 = vadd.f32 %v778, 0.0
        %780 = vst [vmem:[%s529] sm:$0xff] %v779
        %s781 = sand.u32 %s269, 1
        %s782 = scalar_lea.sflag [#allocation4], %s781
        %s783 = sand.u32 %s269, 1
        %s784 = smul.addr %s783, 8
        %s785 = scalar_lea.vmem [#allocation8], %s784
        %s786 = sand.u32 %s297, 1
        %s787 = scalar_lea.sflag [#allocation10], %s786
        %s788 = sand.u32 %s297, 1
        %s789 = smul.addr %s788, 8
        %s790 = scalar_lea.vmem [#allocation9], %s789
        // Predicated region
        $region65: #{tpu_custom_call.1} parent=51 // pred_check
          %p791 = pneg %p279
        $region66: #{tpu_custom_call.1} parent=51 // pred_check_branch
          %793 = sbr.rel (%p791) target = $region68
        $region67: #{tpu_custom_call.1} parent=51 // pred_region
          %s794 = smul.u32 2, %s38
          %s796 = ssub.s32 128, 128
          %797 = vsyncadd %s782, %s796
          %s798 = smul.addr %s37, 2
          %s799 = sadd.s32 %s794, %s798
          %s800 = smul.addr %s799, 64
          %s801 = scalar_lea.hbm %s8, %s800
          %s803 = sshll.u32 %s785, 4
          %s804 = int_to_ptr.vmem [resolvable:$true] %s803
          %806 = dma.vmem_to_hbm [thread:$0]  %s804, 128, %s801, %s782
        $region68: #{tpu_custom_call.1} parent=51 // pred_fallthru
          _
        // Predicated region
        $region69: #{tpu_custom_call.1} parent=51 // pred_check
          %p807 = pneg %p307
        $region70: #{tpu_custom_call.1} parent=51 // pred_check_branch
          %809 = sbr.rel (%p807) target = $region72
        $region71: #{tpu_custom_call.1} parent=51 // pred_region
          %s811 = ssub.s32 128, 128
          %812 = vsyncadd %s787, %s811
          %s813 = sadd.s32 %s38, %s37
          %s814 = smul.addr %s813, 128
          %s815 = scalar_lea.hbm %s9, %s814
          %s817 = sshll.u32 %s790, 4
          %s818 = int_to_ptr.vmem [resolvable:$true] %s817
          %820 = dma.vmem_to_hbm [thread:$0]  %s818, 128, %s815, %s787
        $region72: #{tpu_custom_call.1} parent=51 // pred_fallthru
          _
      $region52: #{tpu_custom_call.1} parent=5 // pred_fallthru
        _
      %p821 = scmp.le.s32.totalorder 2, %s28
      // Predicated region
      $region73: #{tpu_custom_call.1} parent=5 // pred_check
        %p822 = pneg %p821
      $region74: #{tpu_custom_call.1} parent=5 // pred_check_branch
        %824 = sbr.rel (%p822) target = $region76
      $region75: #{tpu_custom_call.1} parent=5 // pred_region
        %s825 = ssub.s32 %s28, 2
        // Predicated region
        $region77: #{tpu_custom_call.1} parent=75 // pred_check
          %p826 = pneg %p285
        $region78: #{tpu_custom_call.1} parent=75 // pred_check_branch
          %828 = sbr.rel (%p826) target = $region80
        $region79: #{tpu_custom_call.1} parent=75 // pred_region
          %s829 = sand.u32 %s270, 1
          %s830 = scalar_lea.sflag [#allocation4], %s829
          %s831 = sand.u32 %s270, 1
          %s832 = smul.addr %s831, 8
          %s833 = scalar_lea.vmem [#allocation8], %s832
          %834 = dma.done %s830, 128
        $region80: #{tpu_custom_call.1} parent=75 // pred_fallthru
          _
        // Predicated region
        $region81: #{tpu_custom_call.1} parent=75 // pred_check
          %p835 = pneg %p313
        $region82: #{tpu_custom_call.1} parent=75 // pred_check_branch
          %837 = sbr.rel (%p835) target = $region84
        $region83: #{tpu_custom_call.1} parent=75 // pred_region
          %s838 = sand.u32 %s298, 1
          %s839 = scalar_lea.sflag [#allocation10], %s838
          %s840 = sand.u32 %s298, 1
          %s841 = smul.addr %s840, 8
          %s842 = scalar_lea.vmem [#allocation9], %s841
          %843 = dma.done %s839, 128
        $region84: #{tpu_custom_call.1} parent=75 // pred_fallthru
          _
      $region76: #{tpu_custom_call.1} parent=5 // pred_fallthru
        _
    $region6: #{tpu_custom_call.1} parent=1 // loop_footer
      %s32 = sadd.s32 1, %s28
    $region7: #{tpu_custom_call.1} parent=1 // loop_footer_branch
      %27 = sbr.rel target = $region3
    $region8: #{tpu_custom_call.1} parent=1 // loop_exit
      _
    %844 = vsyncpa [#allocation3], 1
    %s845 = scalar_lea.sflag [#allocation3], 1
    %846 = vsyncpa %s845, 1
    %847 = vsyncpa [#allocation6], 1
    %s848 = scalar_lea.sflag [#allocation6], 1
    %849 = vsyncpa %s848, 1
    %850 = vsyncpa [#allocation4], 1
    %s851 = scalar_lea.sflag [#allocation4], 1
    %852 = vsyncpa %s851, 1
    %853 = vsyncpa [#allocation10], 1
    %s854 = scalar_lea.sflag [#allocation10], 1
    %855 = vsyncpa %s854, 1

</llo_original>
